<compile_context>
chip_gen: v6e
topology: v6e:2x2x1
jax: 0.10.0
libtpu: 0.0.40
codegen_flags: <defaults>
</compile_context>

<pallas_src>
import functools

import jax
import jax.numpy as jnp
from jax.experimental import pallas as pl
from jax.experimental.pallas import tpu as pltpu


def _attention_kernel(g_ref, x_ref, wg_ref, wx_ref, bg_ref, bx_ref,
                      wp_ref, bp_ref, out_ref):
    # g_ref: (f_g, TILE)   x_ref: (f_l, TILE)   -- pixels on lanes.
    g = g_ref[...]
    x = x_ref[...]

    # Fused (1x1 conv + BN) projections, f32 accumulation: (f_int, TILE)
    h = (jnp.dot(wg_ref[...], g, preferred_element_type=jnp.float32) + bg_ref[...]
         + jnp.dot(wx_ref[...], x, preferred_element_type=jnp.float32) + bx_ref[...])
    h = jnp.maximum(h, 0.0)

    # psi: (f_int -> 1) conv + BN (folded) + sigmoid, done as a VPU
    # multiply-accumulate over the f_int sublanes -> lane-dense (1, TILE).
    psi = jnp.sum(wp_ref[...] * h, axis=0, keepdims=True) + bp_ref[...]
    psi = jax.nn.sigmoid(psi)

    # Gate x by psi (broadcast over the channel sublanes).
    out_ref[...] = (psi * x).astype(out_ref.dtype)


def _fold_bn(conv_w, conv_b, gamma, beta, mean, var, eps=1e-5):
    """Fold inference-mode BatchNorm into a 1x1 conv.

    conv_w: (C_out, C_in) [PyTorch (C_out, C_in, 1, 1) squeezed]
    returns (W_eff (C_out, C_in), b_eff (C_out, 1)) suitable for W_eff @ X.
    """
    scale = gamma / jnp.sqrt(var + eps)                       # (C_out,)
    w_eff = conv_w * scale[:, None]                           # (C_out, C_in)
    b_eff = scale * (conv_b - mean) + beta                    # (C_out,)
    return w_eff.astype(jnp.float32), b_eff[:, None].astype(jnp.float32)


def _round_up(x, m):
    return ((x + m - 1) // m) * m


@functools.partial(jax.jit, static_argnames=("target_tile_pix",))
def attention_block(g, x, params, target_tile_pix=8192):
    """g: (N, f_g, H, W), x: (N, f_l, H, W) float32 NCHW. Returns (N, f_l, H, W)."""
    N, f_g, H, W = g.shape
    _, f_l, _, _ = x.shape

    wg, bg = _fold_bn(params["wg_w"], params["wg_b"], params["bn_g_gamma"],
                      params["bn_g_beta"], params["bn_g_mean"], params["bn_g_var"])
    wx, bx = _fold_bn(params["wx_w"], params["wx_b"], params["bn_x_gamma"],
                      params["bn_x_beta"], params["bn_x_mean"], params["bn_x_var"])
    wp, bp = _fold_bn(params["psi_w"], params["psi_b"], params["bn_p_gamma"],
                      params["bn_p_beta"], params["bn_p_mean"], params["bn_p_var"])
    f_int = wg.shape[0]
    wp_col = wp.reshape(f_int, 1)        # (f_int, 1) for sublane broadcast
    bp = bp.reshape(1, 1)

    # NCHW -> (N, C, H*W): a free view, no transpose / layout change.
    HW = H * W
    g3 = g.reshape(N, f_g, HW)
    x3 = x.reshape(N, f_l, HW)

    # Large lane-aligned pixel tile (multiple of 128); pad lanes only if needed.
    tgt = max(128, (int(target_tile_pix) // 128) * 128)
    tile = min(tgt, _round_up(HW, 128))
    hw_pad = _round_up(HW, tile)
    if hw_pad != HW:
        pad = hw_pad - HW
        g3 = jnp.pad(g3, ((0, 0), (0, 0), (0, pad)))
        x3 = jnp.pad(x3, ((0, 0), (0, 0), (0, pad)))

    grid = (N, hw_pad // tile)
    const = lambda n, t: (0, 0)          # small weights/biases resident in VMEM

    out3 = pl.pallas_call(
        _attention_kernel,
        out_shape=jax.ShapeDtypeStruct((N, f_l, hw_pad), x.dtype),
        grid_spec=pltpu.PrefetchScalarGridSpec(
            num_scalar_prefetch=0,
            grid=grid,
            in_specs=[
                pl.BlockSpec((pl.Squeezed(), f_g, tile), lambda n, t: (n, 0, t)),  # g
                pl.BlockSpec((pl.Squeezed(), f_l, tile), lambda n, t: (n, 0, t)),  # x
                pl.BlockSpec((f_int, f_g), const),   # Wg (BN-folded)
                pl.BlockSpec((f_int, f_l), const),   # Wx (BN-folded)
                pl.BlockSpec((f_int, 1), const),     # bg
                pl.BlockSpec((f_int, 1), const),     # bx
                pl.BlockSpec((f_int, 1), const),     # Wpsi (as column)
                pl.BlockSpec((1, 1), const),         # bpsi
            ],
            out_specs=pl.BlockSpec((pl.Squeezed(), f_l, tile),
                                   lambda n, t: (n, 0, t)),
        ),
        compiler_params=pltpu.CompilerParams(
            dimension_semantics=("parallel", "parallel")),
    )(g3, x3, wg, wx, bg, bx, wp_col, bp)

    if hw_pad != HW:
        out3 = out3[:, :, :HW]
    return out3.reshape(N, f_l, H, W)


def _init_params(key, f_g, f_l, f_int):
    """Deterministic synthetic parameters matching the module's __init__ shapes."""
    ks = jax.random.split(key, 6)
    p = {
        # 1x1 conv weights stored as (C_out, C_in)
        "wg_w": 0.1 * jax.random.normal(ks[0], (f_int, f_g), jnp.float32),
        "wg_b": 0.1 * jax.random.normal(ks[1], (f_int,), jnp.float32),
        "wx_w": 0.1 * jax.random.normal(ks[2], (f_int, f_l), jnp.float32),
        "wx_b": 0.1 * jax.random.normal(ks[3], (f_int,), jnp.float32),
        "psi_w": 0.1 * jax.random.normal(ks[4], (1, f_int), jnp.float32),
        "psi_b": 0.1 * jax.random.normal(ks[5], (1,), jnp.float32),
        # BatchNorm2d params (inference mode / running stats)
        "bn_g_gamma": jnp.linspace(0.9, 1.1, f_int, dtype=jnp.float32),
        "bn_g_beta": jnp.linspace(-0.05, 0.05, f_int, dtype=jnp.float32),
        "bn_g_mean": jnp.linspace(-0.1, 0.1, f_int, dtype=jnp.float32),
        "bn_g_var": jnp.linspace(0.8, 1.2, f_int, dtype=jnp.float32),
        "bn_x_gamma": jnp.linspace(1.1, 0.9, f_int, dtype=jnp.float32),
        "bn_x_beta": jnp.linspace(0.05, -0.05, f_int, dtype=jnp.float32),
        "bn_x_mean": jnp.linspace(0.1, -0.1, f_int, dtype=jnp.float32),
        "bn_x_var": jnp.linspace(1.2, 0.8, f_int, dtype=jnp.float32),
        "bn_p_gamma": jnp.array([1.05], jnp.float32),
        "bn_p_beta": jnp.array([0.02], jnp.float32),
        "bn_p_mean": jnp.array([0.01], jnp.float32),
        "bn_p_var": jnp.array([0.95], jnp.float32),
    }
    return p


def _reference(g, x, params, eps=1e-5):
    """Pure-JAX reference of the PyTorch forward (eval-mode BatchNorm)."""
    def conv1x1_bn(inp, w, b, gm, bt, mu, var):
        # inp NCHW, w (C_out, C_in)
        y = jnp.einsum("nchw,oc->nohw", inp, w) + b[None, :, None, None]
        scale = gm / jnp.sqrt(var + eps)
        return scale[None, :, None, None] * (y - mu[None, :, None, None]) \
            + bt[None, :, None, None]

    g1 = conv1x1_bn(g, params["wg_w"], params["wg_b"], params["bn_g_gamma"],
                    params["bn_g_beta"], params["bn_g_mean"], params["bn_g_var"])
    x1 = conv1x1_bn(x, params["wx_w"], params["wx_b"], params["bn_x_gamma"],
                    params["bn_x_beta"], params["bn_x_mean"], params["bn_x_var"])
    h = jnp.maximum(g1 + x1, 0.0)
    psi = conv1x1_bn(h, params["psi_w"], params["psi_b"], params["bn_p_gamma"],
                     params["bn_p_beta"], params["bn_p_mean"], params["bn_p_var"])
    psi = jax.nn.sigmoid(psi)
    return psi * x


if __name__ == "__main__":
    # Small shapes consistent with the module: f_g = f_l = 4, f_int = 8.
    N, f_g, f_l, f_int, H, W = 2, 4, 4, 8, 16, 16

    key = jax.random.PRNGKey(0)
    kg, kx, kp = jax.random.split(key, 3)
    g = jax.random.normal(kg, (N, f_g, H, W), jnp.float32)
    x = jax.random.normal(kx, (N, f_l, H, W), jnp.float32)
    params = _init_params(kp, f_g, f_l, f_int)

    out = attention_block(g, x, params)
    out = jax.block_until_ready(out)

    ref = _reference(g, x, params)
    assert out.shape == (N, f_l, H, W)
    assert jnp.allclose(out, ref, atol=1e-5, rtol=1e-5), \
        f"max abs err {jnp.max(jnp.abs(out - ref))}"
    print("KERNEL_OK")
</pallas_src>

<mosaic_0001>
module attributes {stable_mosaic.version = 11 : i64} {
  func.func @_attention_kernel(%arg0: i32, %arg1: i32, %arg2: memref<1x4x256xf32, #tpu.memory_space<vmem>>, %arg3: memref<1x4x256xf32, #tpu.memory_space<vmem>>, %arg4: memref<8x4xf32, #tpu.memory_space<vmem>>, %arg5: memref<8x4xf32, #tpu.memory_space<vmem>>, %arg6: memref<8x1xf32, #tpu.memory_space<vmem>>, %arg7: memref<8x1xf32, #tpu.memory_space<vmem>>, %arg8: memref<8x1xf32, #tpu.memory_space<vmem>>, %arg9: memref<1x1xf32, #tpu.memory_space<vmem>>, %arg10: memref<1x4x256xf32, #tpu.memory_space<vmem>>) attributes {dimension_semantics = [#tpu.dimension_semantics<parallel>, #tpu.dimension_semantics<parallel>], iteration_bounds = array<i64: 2, 1>, scalar_prefetch = 0 : i64, scratch_operands = 0 : i64, tpu.core_type = #tpu.core_type<tc>, window_params = [{transform_indices = @transform_0, window_bounds = array<i64: 1, 4, 256>}, {transform_indices = @transform_1, window_bounds = array<i64: 1, 4, 256>}, {pipeline_mode = #tpu.pipeline_mode<synchronous>, transform_indices = @transform_2, window_bounds = array<i64: 8, 4>}, {pipeline_mode = #tpu.pipeline_mode<synchronous>, transform_indices = @transform_3, window_bounds = array<i64: 8, 4>}, {pipeline_mode = #tpu.pipeline_mode<synchronous>, transform_indices = @transform_4, window_bounds = array<i64: 8, 1>}, {pipeline_mode = #tpu.pipeline_mode<synchronous>, transform_indices = @transform_5, window_bounds = array<i64: 8, 1>}, {pipeline_mode = #tpu.pipeline_mode<synchronous>, transform_indices = @transform_6, window_bounds = array<i64: 8, 1>}, {pipeline_mode = #tpu.pipeline_mode<synchronous>, transform_indices = @transform_7, window_bounds = array<i64: 1, 1>}, {transform_indices = @transform_8, window_bounds = array<i64: 1, 4, 256>}]} {
    %c0 = arith.constant 0 : index
    %c0_0 = arith.constant 0 : index
    %c0_1 = arith.constant 0 : index
    %0 = vector.load %arg2[%c0, %c0_0, %c0_1] : memref<1x4x256xf32, #tpu.memory_space<vmem>>, vector<1x4x256xf32>
    %1 = vector.shape_cast %0 : vector<1x4x256xf32> to vector<4x256xf32>
    %c0_2 = arith.constant 0 : index
    %c0_3 = arith.constant 0 : index
    %c0_4 = arith.constant 0 : index
    %2 = vector.load %arg3[%c0_2, %c0_3, %c0_4] : memref<1x4x256xf32, #tpu.memory_space<vmem>>, vector<1x4x256xf32>
    %3 = vector.shape_cast %2 : vector<1x4x256xf32> to vector<4x256xf32>
    %c0_5 = arith.constant 0 : index
    %c0_6 = arith.constant 0 : index
    %4 = vector.load %arg4[%c0_5, %c0_6] : memref<8x4xf32, #tpu.memory_space<vmem>>, vector<8x4xf32>
    %cst = arith.constant dense<0.000000e+00> : vector<8x256xf32>
    %5 = tpu.matmul %4, %1, %cst {dimension_numbers = #tpu.dot_dimension_numbers<[1], [0], [0], [1], [0, 0, 1, 1], [], []>} : vector<8x4xf32>, vector<4x256xf32>, vector<8x256xf32> -> vector<8x256xf32>
    %c0_7 = arith.constant 0 : index
    %c0_8 = arith.constant 0 : index
    %6 = vector.load %arg6[%c0_7, %c0_8] : memref<8x1xf32, #tpu.memory_space<vmem>>, vector<8x1xf32>
    %7 = vector.broadcast %6 : vector<8x1xf32> to vector<8x256xf32>
    %8 = arith.addf %5, %7 : vector<8x256xf32>
    %c0_9 = arith.constant 0 : index
    %c0_10 = arith.constant 0 : index
    %9 = vector.load %arg5[%c0_9, %c0_10] : memref<8x4xf32, #tpu.memory_space<vmem>>, vector<8x4xf32>
    %cst_11 = arith.constant dense<0.000000e+00> : vector<8x256xf32>
    %10 = tpu.matmul %9, %3, %cst_11 {dimension_numbers = #tpu.dot_dimension_numbers<[1], [0], [0], [1], [0, 0, 1, 1], [], []>} : vector<8x4xf32>, vector<4x256xf32>, vector<8x256xf32> -> vector<8x256xf32>
    %11 = arith.addf %8, %10 : vector<8x256xf32>
    %c0_12 = arith.constant 0 : index
    %c0_13 = arith.constant 0 : index
    %12 = vector.load %arg7[%c0_12, %c0_13] : memref<8x1xf32, #tpu.memory_space<vmem>>, vector<8x1xf32>
    %13 = vector.broadcast %12 : vector<8x1xf32> to vector<8x256xf32>
    %14 = arith.addf %11, %13 : vector<8x256xf32>
    %cst_14 = arith.constant 0.000000e+00 : f32
    %15 = vector.broadcast %cst_14 : f32 to vector<8x256xf32>
    %16 = arith.maximumf %14, %15 : vector<8x256xf32>
    %c0_15 = arith.constant 0 : index
    %c0_16 = arith.constant 0 : index
    %17 = vector.load %arg8[%c0_15, %c0_16] : memref<8x1xf32, #tpu.memory_space<vmem>>, vector<8x1xf32>
    %18 = vector.broadcast %17 : vector<8x1xf32> to vector<8x256xf32>
    %19 = arith.mulf %18, %16 : vector<8x256xf32>
    %cst_17 = arith.constant dense<0.000000e+00> : vector<256xf32>
    %20 = vector.multi_reduction <add>, %19, %cst_17 [0] : vector<8x256xf32> to vector<256xf32>
    %21 = vector.shape_cast %20 : vector<256xf32> to vector<1x256xf32>
    %c0_18 = arith.constant 0 : index
    %c0_19 = arith.constant 0 : index
    %22 = vector.load %arg9[%c0_18, %c0_19] : memref<1x1xf32, #tpu.memory_space<vmem>>, vector<1x1xf32>
    %23 = vector.broadcast %22 : vector<1x1xf32> to vector<1x256xf32>
    %24 = arith.addf %21, %23 : vector<1x256xf32>
    %25 = arith.negf %24 : vector<1x256xf32>
    %26 = math.exp %25 : vector<1x256xf32>
    %cst_20 = arith.constant 1.000000e+00 : f32
    %27 = vector.broadcast %cst_20 : f32 to vector<1x256xf32>
    %28 = arith.addf %27, %26 : vector<1x256xf32>
    %29 = arith.divf %27, %28 : vector<1x256xf32>
    %30 = vector.broadcast %29 : vector<1x256xf32> to vector<4x256xf32>
    %31 = arith.mulf %30, %3 : vector<4x256xf32>
    %c0_21 = arith.constant 0 : index
    %c0_22 = arith.constant 0 : index
    %c0_23 = arith.constant 0 : index
    %32 = vector.load %arg10[%c0_21, %c0_22, %c0_23] : memref<1x4x256xf32, #tpu.memory_space<vmem>>, vector<1x4x256xf32>
    %33 = vector.shape_cast %32 : vector<1x4x256xf32> to vector<4x256xf32>
    %34 = vector.shape_cast %31 : vector<4x256xf32> to vector<1x4x256xf32>
    tpu.vector_store %arg10[%c0_21, %c0_22, %c0_23], %34 {strides = array<i32>} : memref<1x4x256xf32, #tpu.memory_space<vmem>>, vector<1x4x256xf32>,
    return
  }
  func.func @transform_0(%arg0: i32, %arg1: i32) -> (i32, i32, i32) {
    %c0_i32 = arith.constant 0 : i32
    %c0_i32_0 = arith.constant 0 : i32
    return %arg0, %c0_i32, %arg1 : i32, i32, i32
  }
  func.func @transform_1(%arg0: i32, %arg1: i32) -> (i32, i32, i32) {
    %c0_i32 = arith.constant 0 : i32
    %c0_i32_0 = arith.constant 0 : i32
    return %arg0, %c0_i32, %arg1 : i32, i32, i32
  }
  func.func @transform_2(%arg0: i32, %arg1: i32) -> (i32, i32) {
    %c0_i32 = arith.constant 0 : i32
    %c0_i32_0 = arith.constant 0 : i32
    %c0_i32_1 = arith.constant 0 : i32
    return %c0_i32, %c0_i32_0 : i32, i32
  }
  func.func @transform_3(%arg0: i32, %arg1: i32) -> (i32, i32) {
    %c0_i32 = arith.constant 0 : i32
    %c0_i32_0 = arith.constant 0 : i32
    %c0_i32_1 = arith.constant 0 : i32
    return %c0_i32, %c0_i32_0 : i32, i32
  }
  func.func @transform_4(%arg0: i32, %arg1: i32) -> (i32, i32) {
    %c0_i32 = arith.constant 0 : i32
    %c0_i32_0 = arith.constant 0 : i32
    %c0_i32_1 = arith.constant 0 : i32
    return %c0_i32, %c0_i32_0 : i32, i32
  }
  func.func @transform_5(%arg0: i32, %arg1: i32) -> (i32, i32) {
    %c0_i32 = arith.constant 0 : i32
    %c0_i32_0 = arith.constant 0 : i32
    %c0_i32_1 = arith.constant 0 : i32
    return %c0_i32, %c0_i32_0 : i32, i32
  }
  func.func @transform_6(%arg0: i32, %arg1: i32) -> (i32, i32) {
    %c0_i32 = arith.constant 0 : i32
    %c0_i32_0 = arith.constant 0 : i32
    %c0_i32_1 = arith.constant 0 : i32
    return %c0_i32, %c0_i32_0 : i32, i32
  }
  func.func @transform_7(%arg0: i32, %arg1: i32) -> (i32, i32) {
    %c0_i32 = arith.constant 0 : i32
    %c0_i32_0 = arith.constant 0 : i32
    %c0_i32_1 = arith.constant 0 : i32
    return %c0_i32, %c0_i32_0 : i32, i32
  }
  func.func @transform_8(%arg0: i32, %arg1: i32) -> (i32, i32, i32) {
    %c0_i32 = arith.constant 0 : i32
    %c0_i32_0 = arith.constant 0 : i32
    return %arg0, %c0_i32, %arg1 : i32, i32, i32
  }
}

</mosaic_0001>

<llo_original>
// kernel: attention_block.1
$region0: #{attention_block.1}
  #allocation0 [shape = 'u32[]', space=smem, size = 0x4, offset = 0x4, fixed_abs, tag = 'smem constant byte address 0x4 - core index']
  #allocation1 [shape = 'u32[144,128]{1,0:T(1,128)}', space=vmem, size = 0x12000, scoped, tag = 'internal scratch']
  #allocation2 [shape = 'f32[1,1]{1,0:T(1,128)S(1)}', space=vmem, size = 0x200, scoped, tag = 'scoped memory for attention_block.1']
  %s0 = inlined_call_operand.vmem [shape: f32[2,4,256], index: 0, kind: input, shape index: {}]
  %s1 = inlined_call_operand.vmem [shape: f32[2,4,256], index: 1, kind: input, shape index: {}]
  %s2 = inlined_call_operand.vmem [shape: f32[8,4], index: 2, kind: input, shape index: {}]
  %s3 = inlined_call_operand.vmem [shape: f32[8,4], index: 3, kind: input, shape index: {}]
  %s4 = inlined_call_operand.vmem [shape: f32[8,1], index: 4, kind: input, shape index: {}]
  %s5 = inlined_call_operand.vmem [shape: f32[8,1], index: 5, kind: input, shape index: {}]
  %s6 = inlined_call_operand.vmem [shape: f32[8,1], index: 6, kind: input, shape index: {}]
  %s7 = inlined_call_operand.<no memory space> [shape: f32[1,1], index: 7, kind: input, shape index: {}]
  %s8 = inlined_call_operand.vmem [shape: f32[2,4,256], index: 8, kind: output, shape index: {}]
  %s9 = sld [smem:[#allocation0]]
  $region65: #{attention_block.1} parent=0
    _
  %s11 = ssub.s32 1, %s9
  %s12 = scalar_select 0, %s11, %s9
  %v13 = vstv %s7
  %14 = vst [vmem:[#allocation2] sm:$0x1] %v13
  loop: start=0, step=1, limit=4
  $region2: #{attention_block.1} parent=0 // loop_pre_header
    _
  $region3: #{attention_block.1} parent=0 // loop_header
    %s16 = sphi 0, %s20
    %p17 = scmp.ge.s32.totalorder %s16, 4
    %s23 = sphi 0, %s35
    %s24 = sphi 0, %s31
    %s25 = sphi 0, %s23
    %s26 = sphi 0, %s24
    %s27 = sphi 0, %s25
    %s28 = sphi 0, %s26
    %s40 = sphi 0, %s42
    %s43 = sphi 0, %s40
    %s44 = sphi 0, %s43
    %s60 = sphi 0, %s44
    %s68 = sphi 0, %s70
    %s71 = sphi 0, %s68
    %s72 = sphi 0, %s71
    %s88 = sphi 0, %s72
    %s92 = sphi 0, %s92
    %s94 = sphi 0, %s92
    %s95 = sphi 0, %s94
    %s109 = sphi 0, %s95
    %s113 = sphi 0, %s113
    %s115 = sphi 0, %s113
    %s116 = sphi 0, %s115
    %s130 = sphi 0, %s116
    %s134 = sphi 0, %s134
    %s136 = sphi 0, %s134
    %s137 = sphi 0, %s136
    %s151 = sphi 0, %s137
    %s155 = sphi 0, %s155
    %s157 = sphi 0, %s155
    %s158 = sphi 0, %s157
    %s172 = sphi 0, %s158
    %s176 = sphi 0, %s176
    %s178 = sphi 0, %s176
    %s179 = sphi 0, %s178
    %s193 = sphi 0, %s179
    %s197 = sphi 0, %s197
    %s199 = sphi 0, %s197
    %s200 = sphi 0, %s199
    %s214 = sphi 0, %s200
    %s222 = sphi 0, %s224
    %s225 = sphi 0, %s222
    %s226 = sphi 0, %s225
    %s242 = sphi 0, %s226
  $region4: #{attention_block.1} parent=0 // loop_header_branch
    %19 = sbr.rel (%p17) target = $region8
  $region5: #{attention_block.1} parent=0 // loop_body
    %s21 = ssub.s32 %s16, 1
    %s22 = ssub.s32 %s16, 2
    %s29 = sadd.s32 1, %s24
    %p30 = scmp.ge.s32.totalorder %s29, 1
    %s31 = scalar_select %p30, 0, %s29
    %s32 = sadd.s32 1, %s23
    %s33 = scalar_select %p30, %s32, %s23
    %p34 = scmp.ge.s32.totalorder %s33, 2
    %s35 = scalar_select %p34, 0, %s33
    %s36 = ssub.s32 %s23, %s35
    %s37 = ssub.s32 %s24, %s31
    %s38 = sor.u32 %s36, %s37
    %p39 = scmp.eq.s32.totalorder %s38, 0
    %s41 = sadd.s32 %s40, 1
    %s42 = scalar_select %p39, %s40, %s41
    %p45 = pneg %p39
    %p46 = scmp.eq.s32.totalorder %s16, 1
    %p47 = por %p45, %p46
    %p48 = scmp.ne.s32.totalorder %s40, %s43
    %p49 = scmp.eq.s32.totalorder %s16, 0
    %p50 = por %p48, %p49
    %p51 = scmp.ne.s32.totalorder %s40, %s43
    %p52 = scmp.eq.s32.totalorder %s21, 1
    %p53 = por %p51, %p52
    %p54 = scmp.ne.s32.totalorder %s43, %s44
    %p55 = scmp.eq.s32.totalorder %s21, 0
    %p56 = por %p54, %p55
    %p57 = scmp.ne.s32.totalorder %s43, %s44
    %p58 = scmp.eq.s32.totalorder %s22, 1
    %p59 = por %p57, %p58
    %p61 = scmp.ne.s32.totalorder %s44, %s60
    %p62 = scmp.eq.s32.totalorder %s22, 0
    %p63 = por %p61, %p62
    %s64 = ssub.s32 %s23, %s35
    %s65 = ssub.s32 %s24, %s31
    %s66 = sor.u32 %s64, %s65
    %p67 = scmp.eq.s32.totalorder %s66, 0
    %s69 = sadd.s32 %s68, 1
    %s70 = scalar_select %p67, %s68, %s69
    %p73 = pneg %p67
    %p74 = scmp.eq.s32.totalorder %s16, 1
    %p75 = por %p73, %p74
    %p76 = scmp.ne.s32.totalorder %s68, %s71
    %p77 = scmp.eq.s32.totalorder %s16, 0
    %p78 = por %p76, %p77
    %p79 = scmp.ne.s32.totalorder %s68, %s71
    %p80 = scmp.eq.s32.totalorder %s21, 1
    %p81 = por %p79, %p80
    %p82 = scmp.ne.s32.totalorder %s71, %s72
    %p83 = scmp.eq.s32.totalorder %s21, 0
    %p84 = por %p82, %p83
    %p85 = scmp.ne.s32.totalorder %s71, %s72
    %p86 = scmp.eq.s32.totalorder %s22, 1
    %p87 = por %p85, %p86
    %p89 = scmp.ne.s32.totalorder %s72, %s88
    %p90 = scmp.eq.s32.totalorder %s22, 0
    %p91 = por %p89, %p90
    %s93 = sadd.s32 %s92, 1
    %p96 = scmp.eq.s32.totalorder %s16, 1
    %p97 = scmp.ne.s32.totalorder %s92, %s94
    %p98 = scmp.eq.s32.totalorder %s16, 0
    %p99 = por %p97, %p98
    %p100 = scmp.ne.s32.totalorder %s92, %s94
    %p101 = scmp.eq.s32.totalorder %s21, 1
    %p102 = por %p100, %p101
    %p103 = scmp.ne.s32.totalorder %s94, %s95
    %p104 = scmp.eq.s32.totalorder %s21, 0
    %p105 = por %p103, %p104
    %p106 = scmp.ne.s32.totalorder %s94, %s95
    %p107 = scmp.eq.s32.totalorder %s22, 1
    %p108 = por %p106, %p107
    %p110 = scmp.ne.s32.totalorder %s95, %s109
    %p111 = scmp.eq.s32.totalorder %s22, 0
    %p112 = por %p110, %p111
    %s114 = sadd.s32 %s113, 1
    %p117 = scmp.eq.s32.totalorder %s16, 1
    %p118 = scmp.ne.s32.totalorder %s113, %s115
    %p119 = scmp.eq.s32.totalorder %s16, 0
    %p120 = por %p118, %p119
    %p121 = scmp.ne.s32.totalorder %s113, %s115
    %p122 = scmp.eq.s32.totalorder %s21, 1
    %p123 = por %p121, %p122
    %p124 = scmp.ne.s32.totalorder %s115, %s116
    %p125 = scmp.eq.s32.totalorder %s21, 0
    %p126 = por %p124, %p125
    %p127 = scmp.ne.s32.totalorder %s115, %s116
    %p128 = scmp.eq.s32.totalorder %s22, 1
    %p129 = por %p127, %p128
    %p131 = scmp.ne.s32.totalorder %s116, %s130
    %p132 = scmp.eq.s32.totalorder %s22, 0
    %p133 = por %p131, %p132
    %s135 = sadd.s32 %s134, 1
    %p138 = scmp.eq.s32.totalorder %s16, 1
    %p139 = scmp.ne.s32.totalorder %s134, %s136
    %p140 = scmp.eq.s32.totalorder %s16, 0
    %p141 = por %p139, %p140
    %p142 = scmp.ne.s32.totalorder %s134, %s136
    %p143 = scmp.eq.s32.totalorder %s21, 1
    %p144 = por %p142, %p143
    %p145 = scmp.ne.s32.totalorder %s136, %s137
    %p146 = scmp.eq.s32.totalorder %s21, 0
    %p147 = por %p145, %p146
    %p148 = scmp.ne.s32.totalorder %s136, %s137
    %p149 = scmp.eq.s32.totalorder %s22, 1
    %p150 = por %p148, %p149
    %p152 = scmp.ne.s32.totalorder %s137, %s151
    %p153 = scmp.eq.s32.totalorder %s22, 0
    %p154 = por %p152, %p153
    %s156 = sadd.s32 %s155, 1
    %p159 = scmp.eq.s32.totalorder %s16, 1
    %p160 = scmp.ne.s32.totalorder %s155, %s157
    %p161 = scmp.eq.s32.totalorder %s16, 0
    %p162 = por %p160, %p161
    %p163 = scmp.ne.s32.totalorder %s155, %s157
    %p164 = scmp.eq.s32.totalorder %s21, 1
    %p165 = por %p163, %p164
    %p166 = scmp.ne.s32.totalorder %s157, %s158
    %p167 = scmp.eq.s32.totalorder %s21, 0
    %p168 = por %p166, %p167
    %p169 = scmp.ne.s32.totalorder %s157, %s158
    %p170 = scmp.eq.s32.totalorder %s22, 1
    %p171 = por %p169, %p170
    %p173 = scmp.ne.s32.totalorder %s158, %s172
    %p174 = scmp.eq.s32.totalorder %s22, 0
    %p175 = por %p173, %p174
    %s177 = sadd.s32 %s176, 1
    %p180 = scmp.eq.s32.totalorder %s16, 1
    %p181 = scmp.ne.s32.totalorder %s176, %s178
    %p182 = scmp.eq.s32.totalorder %s16, 0
    %p183 = por %p181, %p182
    %p184 = scmp.ne.s32.totalorder %s176, %s178
    %p185 = scmp.eq.s32.totalorder %s21, 1
    %p186 = por %p184, %p185
    %p187 = scmp.ne.s32.totalorder %s178, %s179
    %p188 = scmp.eq.s32.totalorder %s21, 0
    %p189 = por %p187, %p188
    %p190 = scmp.ne.s32.totalorder %s178, %s179
    %p191 = scmp.eq.s32.totalorder %s22, 1
    %p192 = por %p190, %p191
    %p194 = scmp.ne.s32.totalorder %s179, %s193
    %p195 = scmp.eq.s32.totalorder %s22, 0
    %p196 = por %p194, %p195
    %s198 = sadd.s32 %s197, 1
    %p201 = scmp.eq.s32.totalorder %s16, 1
    %p202 = scmp.ne.s32.totalorder %s197, %s199
    %p203 = scmp.eq.s32.totalorder %s16, 0
    %p204 = por %p202, %p203
    %p205 = scmp.ne.s32.totalorder %s197, %s199
    %p206 = scmp.eq.s32.totalorder %s21, 1
    %p207 = por %p205, %p206
    %p208 = scmp.ne.s32.totalorder %s199, %s200
    %p209 = scmp.eq.s32.totalorder %s21, 0
    %p210 = por %p208, %p209
    %p211 = scmp.ne.s32.totalorder %s199, %s200
    %p212 = scmp.eq.s32.totalorder %s22, 1
    %p213 = por %p211, %p212
    %p215 = scmp.ne.s32.totalorder %s200, %s214
    %p216 = scmp.eq.s32.totalorder %s22, 0
    %p217 = por %p215, %p216
    %s218 = ssub.s32 %s23, %s35
    %s219 = ssub.s32 %s24, %s31
    %s220 = sor.u32 %s218, %s219
    %p221 = scmp.eq.s32.totalorder %s220, 0
    %s223 = sadd.s32 %s222, 1
    %s224 = scalar_select %p221, %s222, %s223
    %p227 = pneg %p221
    %p228 = scmp.eq.s32.totalorder %s16, 1
    %p229 = por %p227, %p228
    %p230 = scmp.ne.s32.totalorder %s222, %s225
    %p231 = scmp.eq.s32.totalorder %s16, 0
    %p232 = por %p230, %p231
    %p233 = scmp.ne.s32.totalorder %s222, %s225
    %p234 = scmp.eq.s32.totalorder %s21, 1
    %p235 = por %p233, %p234
    %p236 = scmp.ne.s32.totalorder %s225, %s226
    %p237 = scmp.eq.s32.totalorder %s21, 0
    %p238 = por %p236, %p237
    %p239 = scmp.ne.s32.totalorder %s225, %s226
    %p240 = scmp.eq.s32.totalorder %s22, 1
    %p241 = por %p239, %p240
    %p243 = scmp.ne.s32.totalorder %s226, %s242
    %p244 = scmp.eq.s32.totalorder %s22, 0
    %p245 = por %p243, %p244
    %p246 = scmp.le.s32.totalorder 1, %s16
    %p247 = scmp.lt.s32.totalorder %s16, 3
    %p248 = pnand %p246, %p247
    %p249 = pneg %p248
    // Predicated region
    $region9: #{attention_block.1} parent=5 // pred_check
      _
    $region10: #{attention_block.1} parent=5 // pred_check_branch
      %251 = sbr.rel (%p248) target = $region12
    $region11: #{attention_block.1} parent=5 // pred_region
      %s252 = ssub.s32 %s16, 1
      // Predicated region
      $region13: #{attention_block.1} parent=11 // pred_check
        %p253 = pneg %p105
      $region14: #{attention_block.1} parent=11 // pred_check_branch
        %255 = sbr.rel (%p253) target = $region16
      $region15: #{attention_block.1} parent=11 // pred_region
        _
      $region16: #{attention_block.1} parent=11 // pred_fallthru
        _
      // Predicated region
      $region17: #{attention_block.1} parent=11 // pred_check
        %p256 = pneg %p126
      $region18: #{attention_block.1} parent=11 // pred_check_branch
        %258 = sbr.rel (%p256) target = $region20
      $region19: #{attention_block.1} parent=11 // pred_region
        _
      $region20: #{attention_block.1} parent=11 // pred_fallthru
        _
      // Predicated region
      $region21: #{attention_block.1} parent=11 // pred_check
        %p259 = pneg %p147
      $region22: #{attention_block.1} parent=11 // pred_check_branch
        %261 = sbr.rel (%p259) target = $region24
      $region23: #{attention_block.1} parent=11 // pred_region
        _
      $region24: #{attention_block.1} parent=11 // pred_fallthru
        _
      // Predicated region
      $region25: #{attention_block.1} parent=11 // pred_check
        %p262 = pneg %p168
      $region26: #{attention_block.1} parent=11 // pred_check_branch
        %264 = sbr.rel (%p262) target = $region28
      $region27: #{attention_block.1} parent=11 // pred_region
        _
      $region28: #{attention_block.1} parent=11 // pred_fallthru
        _
      // Predicated region
      $region29: #{attention_block.1} parent=11 // pred_check
        %p265 = pneg %p189
      $region30: #{attention_block.1} parent=11 // pred_check_branch
        %267 = sbr.rel (%p265) target = $region32
      $region31: #{attention_block.1} parent=11 // pred_region
        _
      $region32: #{attention_block.1} parent=11 // pred_fallthru
        _
      // Predicated region
      $region33: #{attention_block.1} parent=11 // pred_check
        %p268 = pneg %p210
      $region34: #{attention_block.1} parent=11 // pred_check_branch
        %270 = sbr.rel (%p268) target = $region36
      $region35: #{attention_block.1} parent=11 // pred_region
        _
      $region36: #{attention_block.1} parent=11 // pred_fallthru
        _
    $region12: #{attention_block.1} parent=5 // pred_fallthru
      _
    %p271 = scmp.lt.s32.totalorder %s16, 2
    // Predicated region
    $region37: #{attention_block.1} parent=5 // pred_check
      %p272 = pneg %p271
    $region38: #{attention_block.1} parent=5 // pred_check_branch
      %274 = sbr.rel (%p272) target = $region40
    $region39: #{attention_block.1} parent=5 // pred_region
      // Predicated region
      $region41: #{attention_block.1} parent=39 // pred_check
        %p275 = pneg %p50
      $region42: #{attention_block.1} parent=39 // pred_check_branch
        %277 = sbr.rel (%p275) target = $region44
      $region43: #{attention_block.1} parent=39 // pred_region
        %s278 = smul.u32 2, %s24
        %p279 = scmp.lt.s32.totalorder %s23, 1
        %s280 = scalar_select %p279, %s23, 1
        %p281 = scmp.lt.s32.totalorder %s278, 1
        %s282 = scalar_select %p281, %s278, 1
        %s283 = smul.addr %s280, 2
        %s284 = sadd.s32 %s282, %s283
        %s285 = smul.addr %s284, 4
        %s286 = scalar_lea.vmem %s0, %s285
        %s287 = smul.u32 2, %s24
      $region44: #{attention_block.1} parent=39 // pred_fallthru
        _
      // Predicated region
      $region45: #{attention_block.1} parent=39 // pred_check
        %p288 = pneg %p78
      $region46: #{attention_block.1} parent=39 // pred_check_branch
        %290 = sbr.rel (%p288) target = $region48
      $region47: #{attention_block.1} parent=39 // pred_region
        %s291 = smul.u32 2, %s24
        %p292 = scmp.lt.s32.totalorder %s23, 1
        %s293 = scalar_select %p292, %s23, 1
        %p294 = scmp.lt.s32.totalorder %s291, 1
        %s295 = scalar_select %p294, %s291, 1
        %s296 = smul.addr %s293, 2
        %s297 = sadd.s32 %s295, %s296
        %s298 = smul.addr %s297, 4
        %s299 = scalar_lea.vmem %s1, %s298
        %s300 = smul.u32 2, %s24
      $region48: #{attention_block.1} parent=39 // pred_fallthru
        _
    $region40: #{attention_block.1} parent=5 // pred_fallthru
      _
    %p301 = scmp.le.s32.totalorder 1, %s16
    %p302 = scmp.lt.s32.totalorder %s16, 3
    %p303 = pnand %p301, %p302
    %p304 = pneg %p303
    // Predicated region
    $region49: #{attention_block.1} parent=5 // pred_check
      _
    $region50: #{attention_block.1} parent=5 // pred_check_branch
      %306 = sbr.rel (%p303) target = $region52
    $region51: #{attention_block.1} parent=5 // pred_region
      %s307 = ssub.s32 %s16, 1
      %s308 = smul.u32 2, %s26
      %p309 = scmp.lt.s32.totalorder %s25, 1
      %s310 = scalar_select %p309, %s25, 1
      %p311 = scmp.lt.s32.totalorder %s308, 1
      %s312 = scalar_select %p311, %s308, 1
      %s313 = smul.addr %s310, 2
      %s314 = sadd.s32 %s312, %s313
      %s315 = smul.addr %s314, 4
      %s316 = scalar_lea.vmem %s0, %s315
      %p317 = pneg %p56
      %p318 = pneg %p53
      %s319 = smul.u32 2, %s26
      %p320 = scmp.lt.s32.totalorder %s25, 1
      %s321 = scalar_select %p320, %s25, 1
      %p322 = scmp.lt.s32.totalorder %s319, 1
      %s323 = scalar_select %p322, %s319, 1
      %s324 = smul.addr %s321, 2
      %s325 = sadd.s32 %s323, %s324
      %s326 = smul.addr %s325, 4
      %s327 = scalar_lea.vmem %s1, %s326
      %p328 = pneg %p84
      %p329 = pneg %p81
      %p330 = pneg %p105
      %p331 = pneg %p102
      %p332 = pneg %p126
      %p333 = pneg %p123
      %p334 = pneg %p147
      %p335 = pneg %p144
      %p336 = pneg %p168
      %p337 = pneg %p165
      %p338 = pneg %p189
      %p339 = pneg %p186
      %p340 = pneg %p210
      %p341 = pneg %p207
      %p342 = pneg %p238
      %p343 = pneg %p235
      %s344 = smul.u32 2, %s26
      %p345 = scmp.lt.s32.totalorder %s25, 1
      %s346 = scalar_select %p345, %s25, 1
      %p347 = scmp.lt.s32.totalorder %s344, 1
      %s348 = scalar_select %p347, %s344, 1
      %s349 = smul.addr %s346, 2
      %s350 = sadd.s32 %s348, %s349
      %s351 = smul.addr %s350, 4
      %s352 = scalar_lea.vmem %s8, %s351
      %s353 = smul.u32 2, %s26
      %p354 = scmp.lt.s32.totalorder %s25, 1
      %s355 = scalar_select %p354, %s25, 1
      %p356 = scmp.lt.s32.totalorder %s353, 1
      %s357 = scalar_select %p356, %s353, 1
      %s358 = smul.addr %s355, 2
      %s359 = sadd.s32 %s357, %s358
      %s360 = smul.addr %s359, 4
      %s361 = scalar_lea.vmem %s0, %s360
      %s362 = smul.u32 2, %s26
      %s363 = smul.u32 2, %s26
      %p364 = scmp.lt.s32.totalorder %s25, 1
      %s365 = scalar_select %p364, %s25, 1
      %p366 = scmp.lt.s32.totalorder %s363, 1
      %s367 = scalar_select %p366, %s363, 1
      %s368 = smul.addr %s365, 2
      %s369 = sadd.s32 %s367, %s368
      %s370 = smul.addr %s369, 4
      %s371 = scalar_lea.vmem %s1, %s370
      %s372 = smul.u32 2, %s26
      %s373 = smul.u32 2, %s26
      %p374 = scmp.lt.s32.totalorder %s25, 1
      %s375 = scalar_select %p374, %s25, 1
      %p376 = scmp.lt.s32.totalorder %s373, 1
      %s377 = scalar_select %p376, %s373, 1
      %s378 = smul.addr %s375, 2
      %s379 = sadd.s32 %s377, %s378
      %s380 = smul.addr %s379, 4
      %s381 = scalar_lea.vmem %s8, %s380
      %s382 = smul.u32 2, %s26
      %v383 = vld [vmem:[%s361] sm:$0xff]
      %v384 = vld [vmem:[%s371] sm:$0xff]
      %v385 = vld [vmem:[%s2] sm:$0xff]
      %v386 = vld [vmem:[%s4] sm:$0xff]
      %388 = vset.pattern.permute.xlu0 0
      %389 = vperm.xlu0 %388, %v386
      %v390 = vpop.permute.xlu0 %389
      %v393 = vcombine.high %v383, %v383
      %vm394 = vcmask 31744
      %v396 = vsel %vm394, %v385, 0
      %vm398 = vcmask 1043456
      %v399 = vsel %vm398, %v383, 0
      %v401 = vsel %vm398, %v393, 0
      %403 = vmatprep.subr.mxu0 0.0
      %404 = vmatpush1.msra.mxu0 0.0
      %405 = vmatprep.subr.mxu0 0.0
      %406 = vmatpush1.msra.mxu0 0.0
      %407 = vmatprep.subr.mxu0 0.0
      %408 = vmatpush1.msra.mxu0 0.0
      %409 = vmatprep.subr.mxu0 0.0
      %410 = vmatpush1.msra.mxu0 0.0
      %411 = vmatprep.subr.mxu0 0.0
      %412 = vmatpush1.msra.mxu0 0.0
      %413 = vmatprep.subr.mxu0 0.0
      %414 = vmatpush1.msra.mxu0 0.0
      %415 = vmatprep.subr.mxu0 0.0
      %416 = vmatpush1.msra.mxu0 0.0
      %417 = vmatprep.subr.mxu0 0.0
      %418 = vmatpush1.msra.mxu0 0.0
      %419 = vmatprep.subr.mxu0 0.0
      %420 = vmatpush1.msra.mxu0 0.0
      %421 = vmatprep.subr.mxu0 0.0
      %422 = vmatpush1.msra.mxu0 0.0
      %423 = vmatprep.subr.mxu0 0.0
      %424 = vmatpush1.msra.mxu0 0.0
      %425 = vmatprep.subr.mxu0 0.0
      %426 = vmatpush1.msra.mxu0 0.0
      %427 = vmatprep.subr.mxu0 0.0
      %428 = vmatpush1.msra.mxu0 0.0
      %429 = vmatprep.subr.mxu0 0.0
      %430 = vmatpush1.msra.mxu0 0.0
      %431 = vmatprep.subr.mxu0 0.0
      %432 = vmatpush1.msra.mxu0 0.0
      %433 = vmatprep.subr.mxu0 %v401
      %434 = vmatpush1.msra.mxu0 %v399
      %435 = vmatprep.subr.mxu0 0.0
      %436 = vmatpush2.msra.mxu0 0.0
      %437 = vmatprep.subr.mxu0 0.0
      %438 = vmatpush2.msra.mxu0 0.0
      %439 = vmatprep.subr.mxu0 0.0
      %440 = vmatpush2.msra.mxu0 0.0
      %441 = vmatprep.subr.mxu0 0.0
      %442 = vmatpush2.msra.mxu0 0.0
      %443 = vmatprep.subr.mxu0 0.0
      %444 = vmatpush2.msra.mxu0 0.0
      %445 = vmatprep.subr.mxu0 0.0
      %446 = vmatpush2.msra.mxu0 0.0
      %447 = vmatprep.subr.mxu0 0.0
      %448 = vmatpush2.msra.mxu0 0.0
      %449 = vmatprep.subr.mxu0 0.0
      %450 = vmatpush2.msra.mxu0 0.0
      %451 = vmatprep.subr.mxu0 0.0
      %452 = vmatpush2.msra.mxu0 0.0
      %453 = vmatprep.subr.mxu0 0.0
      %454 = vmatpush2.msra.mxu0 0.0
      %455 = vmatprep.subr.mxu0 0.0
      %456 = vmatpush2.msra.mxu0 0.0
      %457 = vmatprep.subr.mxu0 0.0
      %458 = vmatpush2.msra.mxu0 0.0
      %459 = vmatprep.subr.mxu0 0.0
      %460 = vmatpush2.msra.mxu0 0.0
      %461 = vmatprep.subr.mxu0 0.0
      %462 = vmatpush2.msra.mxu0 0.0
      %463 = vmatprep.subr.mxu0 0.0
      %464 = vmatpush2.msra.mxu0 0.0
      %465 = vmatprep.subr.mxu0 0.0
      %466 = vmatpush2.msra.mxu0 0.0
      %467 = vmatprep.mubr.f32.mxu0 0.0
      %468 = vmatmul.mubr.f32.gmra.mxu0 %v396
      %v469 = vpop.f32.mrf.mxu0
      %v470 = vadd.f32 %v390, %v469
      %v471 = vpop.f32.mrf.mxu0
      %v472 = vadd.f32 %v390, %v471
      %473 = vdwg.mxu0
      %v474 = vld [vmem:[%s3] sm:$0xff]
      %v476 = vcombine.high %v384, %v384
      %v478 = vsel %vm394, %v474, 0
      %v480 = vsel %vm398, %v384, 0
      %v482 = vsel %vm398, %v476, 0
      %484 = vmatprep.subr.mxu0 0.0
      %485 = vmatpush1.msra.mxu0 0.0
      %486 = vmatprep.subr.mxu0 0.0
      %487 = vmatpush1.msra.mxu0 0.0
      %488 = vmatprep.subr.mxu0 0.0
      %489 = vmatpush1.msra.mxu0 0.0
      %490 = vmatprep.subr.mxu0 0.0
      %491 = vmatpush1.msra.mxu0 0.0
      %492 = vmatprep.subr.mxu0 0.0
      %493 = vmatpush1.msra.mxu0 0.0
      %494 = vmatprep.subr.mxu0 0.0
      %495 = vmatpush1.msra.mxu0 0.0
      %496 = vmatprep.subr.mxu0 0.0
      %497 = vmatpush1.msra.mxu0 0.0
      %498 = vmatprep.subr.mxu0 0.0
      %499 = vmatpush1.msra.mxu0 0.0
      %500 = vmatprep.subr.mxu0 0.0
      %501 = vmatpush1.msra.mxu0 0.0
      %502 = vmatprep.subr.mxu0 0.0
      %503 = vmatpush1.msra.mxu0 0.0
      %504 = vmatprep.subr.mxu0 0.0
      %505 = vmatpush1.msra.mxu0 0.0
      %506 = vmatprep.subr.mxu0 0.0
      %507 = vmatpush1.msra.mxu0 0.0
      %508 = vmatprep.subr.mxu0 0.0
      %509 = vmatpush1.msra.mxu0 0.0
      %510 = vmatprep.subr.mxu0 0.0
      %511 = vmatpush1.msra.mxu0 0.0
      %512 = vmatprep.subr.mxu0 0.0
      %513 = vmatpush1.msra.mxu0 0.0
      %514 = vmatprep.subr.mxu0 %v482
      %515 = vmatpush1.msra.mxu0 %v480
      %516 = vmatprep.subr.mxu0 0.0
      %517 = vmatpush2.msra.mxu0 0.0
      %518 = vmatprep.subr.mxu0 0.0
      %519 = vmatpush2.msra.mxu0 0.0
      %520 = vmatprep.subr.mxu0 0.0
      %521 = vmatpush2.msra.mxu0 0.0
      %522 = vmatprep.subr.mxu0 0.0
      %523 = vmatpush2.msra.mxu0 0.0
      %524 = vmatprep.subr.mxu0 0.0
      %525 = vmatpush2.msra.mxu0 0.0
      %526 = vmatprep.subr.mxu0 0.0
      %527 = vmatpush2.msra.mxu0 0.0
      %528 = vmatprep.subr.mxu0 0.0
      %529 = vmatpush2.msra.mxu0 0.0
      %530 = vmatprep.subr.mxu0 0.0
      %531 = vmatpush2.msra.mxu0 0.0
      %532 = vmatprep.subr.mxu0 0.0
      %533 = vmatpush2.msra.mxu0 0.0
      %534 = vmatprep.subr.mxu0 0.0
      %535 = vmatpush2.msra.mxu0 0.0
      %536 = vmatprep.subr.mxu0 0.0
      %537 = vmatpush2.msra.mxu0 0.0
      %538 = vmatprep.subr.mxu0 0.0
      %539 = vmatpush2.msra.mxu0 0.0
      %540 = vmatprep.subr.mxu0 0.0
      %541 = vmatpush2.msra.mxu0 0.0
      %542 = vmatprep.subr.mxu0 0.0
      %543 = vmatpush2.msra.mxu0 0.0
      %544 = vmatprep.subr.mxu0 0.0
      %545 = vmatpush2.msra.mxu0 0.0
      %546 = vmatprep.subr.mxu0 0.0
      %547 = vmatpush2.msra.mxu0 0.0
      %548 = vmatprep.mubr.f32.mxu0 0.0
      %549 = vmatmul.mubr.f32.gmra.mxu0 %v478
      %v550 = vpop.f32.mrf.mxu0
      %v551 = vadd.f32 0.0, %v550
      %v552 = vpop.f32.mrf.mxu0
      %v553 = vadd.f32 0.0, %v552
      %554 = vdwg.mxu0
      %v555 = vadd.f32 %v470, %v551
      %v556 = vadd.f32 %v472, %v553
      %v557 = vld [vmem:[%s5] sm:$0xff]
      %559 = vset.pattern.permute.xlu0 0
      %560 = vperm.xlu0 %559, %v557
      %v561 = vpop.permute.xlu0 %560
      %v563 = vadd.f32 %v555, %v561
      %v564 = vadd.f32 %v556, %v561
      %v565 = vmax.f32 %v563, 0.0
      %v566 = vmax.f32 %v564, 0.0
      %v567 = vld [vmem:[%s6] sm:$0xff]
      %569 = vset.pattern.permute.xlu0 0
      %570 = vperm.xlu0 %569, %v567
      %v571 = vpop.permute.xlu0 %570
      %v573 = vmul.f32 %v571, %v565
      %v574 = vmul.f32 %v571, %v566
      %v575 = vrot.slane %v573, 4
      %v576 = vadd.f32 %v573, %v575
      %v577 = vrot.slane %v576, 2
      %v578 = vadd.f32 %v576, %v577
      %v579 = vrot.slane %v578, 1
      %v580 = vadd.f32 %v578, %v579
      %v581 = vrot.slane %v574, 4
      %v582 = vadd.f32 %v574, %v581
      %v583 = vrot.slane %v582, 2
      %v584 = vadd.f32 %v582, %v583
      %v585 = vrot.slane %v584, 1
      %v586 = vadd.f32 %v584, %v585
      %v587 = vld [vmem:[#allocation2] sm:$0x1]
      %589 = vset.pattern.permute.xlu0 0
      %590 = vperm.xlu0 %589, %v587
      %v591 = vpop.permute.xlu0 %590
      %v593 = vlaneseq
      %v594 = vshrl.u32 %v593, 7
      %v595 = vsub.s32 0, %v594
      %v596 = vrot.slane %v591, %v595
      %v597 = vadd.f32 %v580, %v596
      %v598 = vadd.f32 %v586, %v596
      %v599 = vxor.u32 %v597, 2147483648
      %v600 = vxor.u32 %v598, 2147483648
      %v601 = vmul.f32 %v599, 1.442695
      %v602 = vpow.pop %v601
      %v603 = vmul.f32 %v600, 1.442695
      %v604 = vpow.pop %v603
      %v605 = vadd.f32 %v602, 1.0
      %v606 = vadd.f32 %v604, 1.0
      %v607 = vrcp.pop %v605
      %v608 = vmul.f32 1.0, %v607
      %v609 = vrcp.pop %v606
      %v610 = vmul.f32 1.0, %v609
      %v612 = vmul.f32 %v608, %v384
      %v613 = vmul.f32 %v610, %v476
      %v616 = vcombine.low %v612, %v613
      %618 = vst [vmem:[%s381] sm:$0xff] %v616
      %s619 = smul.u32 2, %s26
      %p620 = scmp.lt.s32.totalorder %s25, 1
      %s621 = scalar_select %p620, %s25, 1
      %p622 = scmp.lt.s32.totalorder %s619, 1
      %s623 = scalar_select %p622, %s619, 1
      %s624 = smul.addr %s621, 2
      %s625 = sadd.s32 %s623, %s624
      %s626 = smul.addr %s625, 4
      %s627 = scalar_lea.vmem %s8, %s626
      // Predicated region
      $region53: #{attention_block.1} parent=51 // pred_check
        %p628 = pneg %p235
      $region54: #{attention_block.1} parent=51 // pred_check_branch
        %630 = sbr.rel (%p628) target = $region56
      $region55: #{attention_block.1} parent=51 // pred_region
        %s631 = smul.u32 2, %s26
      $region56: #{attention_block.1} parent=51 // pred_fallthru
        _
    $region52: #{attention_block.1} parent=5 // pred_fallthru
      _
    %p632 = scmp.le.s32.totalorder 2, %s16
    // Predicated region
    $region57: #{attention_block.1} parent=5 // pred_check
      %p633 = pneg %p632
    $region58: #{attention_block.1} parent=5 // pred_check_branch
      %635 = sbr.rel (%p633) target = $region60
    $region59: #{attention_block.1} parent=5 // pred_region
      %s636 = ssub.s32 %s16, 2
      // Predicated region
      $region61: #{attention_block.1} parent=59 // pred_check
        %p637 = pneg %p241
      $region62: #{attention_block.1} parent=59 // pred_check_branch
        %639 = sbr.rel (%p637) target = $region64
      $region63: #{attention_block.1} parent=59 // pred_region
        %s640 = smul.u32 2, %s28
        %p641 = scmp.lt.s32.totalorder %s27, 1
        %s642 = scalar_select %p641, %s27, 1
        %p643 = scmp.lt.s32.totalorder %s640, 1
        %s644 = scalar_select %p643, %s640, 1
        %s645 = smul.addr %s642, 2
        %s646 = sadd.s32 %s644, %s645
        %s647 = smul.addr %s646, 4
        %s648 = scalar_lea.vmem %s8, %s647
      $region64: #{attention_block.1} parent=59 // pred_fallthru
        _
    $region60: #{attention_block.1} parent=5 // pred_fallthru
      _
  $region6: #{attention_block.1} parent=0 // loop_footer
    %s20 = sadd.s32 1, %s16
  $region7: #{attention_block.1} parent=0 // loop_footer_branch
    %15 = sbr.rel target = $region3
  $region8: #{attention_block.1} parent=0 // loop_exit
    _

</llo_original>
